<compile_context>
chip_gen: v6e
topology: v6e:2x2x1
jax: 0.10.0
libtpu: 0.0.40
codegen_flags: <defaults>
</compile_context>

<pallas_src>
import jax
import jax.numpy as jnp
from jax.experimental import pallas as pl
from jax.experimental.pallas import tpu as pltpu


# ----------------------------------------------------------------------------
# MADE masks (deterministic: identity input ordering instead of pyro's randperm)
# ----------------------------------------------------------------------------
def made_masks(in_dim, h_dim):
    in_deg = jnp.arange(1, in_dim + 1)                                   # (D,)
    hid_deg = (jnp.arange(h_dim) % max(in_dim - 1, 1)) + 1               # (H,)
    out_deg = jnp.tile(in_deg, 2)                                        # (2D,) [mu | log_sigma]
    mask1 = (hid_deg[None, :] >= in_deg[:, None]).astype(jnp.float32)    # (D, H)
    mask2 = (out_deg[None, :] > hid_deg[:, None]).astype(jnp.float32)    # (H, 2D)
    return mask1, mask2


def _round_up(v, m):
    return ((v + m - 1) // m) * m


# ----------------------------------------------------------------------------
# Pallas kernel: masked MLP + affine transform + log-det, feature-major layout
#   xt_ref   : (D, Bt)   bf16 activations (batch on the lane axis)
#   w1t_ref  : (H, D)    bf16 masked W1^T              (VMEM-resident)
#   b1_ref   : (H, 1)    f32
#   w2t_ref  : (2D, H)   bf16 masked W2^T = [mu ; ls]  (VMEM-resident)
#   b2_ref   : (2D, 1)   f32
#   res_ref  : (D, Bt)   f32 result^T  (lane-dense)
#   ld_ref   : (1, Bt)   f32 log_det   (lane-dense)
# ----------------------------------------------------------------------------
def _ia_kernel(xt_ref, w1t_ref, b1_ref, w2t_ref, b2_ref, res_ref, ld_ref):
    D = res_ref.shape[0]
    x_bf = xt_ref[...]                                                   # (D, Bt) bf16

    # hidden layer: bf16 MXU operands, f32 accumulation
    h = jnp.dot(w1t_ref[...], x_bf,
                preferred_element_type=jnp.float32) + b1_ref[...]        # (H, Bt) f32
    h = jnp.maximum(h, 0.0)

    # output layer: ONE fused matmul -> [mu ; log_sigma] stacked on sublanes
    out = jnp.dot(w2t_ref[...], h.astype(jnp.bfloat16),
                  preferred_element_type=jnp.float32) + b2_ref[...]      # (2D, Bt) f32
    mu = out[:D, :]                                                      # 8-aligned slice
    ls = out[D:, :]

    # result = mu + x * exp(log_sigma)   (f32 epilogue, f32 store)
    x_f32 = x_bf.astype(jnp.float32)
    res_ref[...] = mu + x_f32 * jnp.exp(ls)                              # (D, Bt)

    # log_det = sum over the feature (sublane) axis -> lane-dense slab
    ld_ref[...] = jnp.sum(ls, axis=0, keepdims=True)                     # (1, Bt)


def ia_transform(x, w1, b1, w2, b2, mask1, mask2, perm, inv_perm=None,
                 *, block_b=8192, act_dtype=jnp.bfloat16):
    """x: (B, D) float32. Returns (result (B, D) f32, log_det (B,) f32)."""
    B, D = x.shape
    H = w1.shape[1]

    # ---- parameter setup (glue): mask and transpose the weights, keep bf16 --
    w1t = (w1 * mask1).T.astype(act_dtype)                   # (H, D)
    w2t = (w2 * mask2).T.astype(act_dtype)                   # (2D, H): rows [mu | ls]
    b1c = b1.reshape(H, 1).astype(jnp.float32)
    b2c = b2.reshape(2 * D, 1).astype(jnp.float32)

    # ---- fuse the batch permutation into the input gather ------------------
    # Rows are independent, so result[perm] == f(x[perm]); XLA fuses the
    # gather + transpose + bf16 cast into a single pass over x.
    xt = x[perm].T.astype(act_dtype)                          # (D, B)

    # ---- batch tiling: lane axis carries B_tile (multiple of 128) ----------
    # Large tiles amortize per-step overhead; cap at ~ceil(B/2) so there are
    # at least 2 grid steps for megacore sharding on v7x.
    blk = max(128, (block_b // 128) * 128)
    bt = max(128, min(blk, _round_up((B + 1) // 2, 128)))
    n_blocks = pl.cdiv(B, bt)
    Bp = n_blocks * bt
    if Bp != B:
        xt = jnp.pad(xt, ((0, 0), (0, Bp - B)))

    res_t, ld_t = pl.pallas_call(
        _ia_kernel,
        out_shape=(
            jax.ShapeDtypeStruct((D, Bp), jnp.float32),       # f32 result^T (no post-cast)
            jax.ShapeDtypeStruct((1, Bp), jnp.float32),
        ),
        grid_spec=pltpu.PrefetchScalarGridSpec(
            num_scalar_prefetch=0,
            grid=(n_blocks,),
            in_specs=[
                pl.BlockSpec((D, bt), lambda i: (0, i)),      # x^T tile (pipelined)
                pl.BlockSpec((H, D), lambda i: (0, 0)),       # weights: constant block
                pl.BlockSpec((H, 1), lambda i: (0, 0)),       #   index -> VMEM-resident
                pl.BlockSpec((2 * D, H), lambda i: (0, 0)),
                pl.BlockSpec((2 * D, 1), lambda i: (0, 0)),
            ],
            out_specs=[
                pl.BlockSpec((D, bt), lambda i: (0, i)),      # result^T tile
                pl.BlockSpec((1, bt), lambda i: (0, i)),      # log_det slab
            ],
        ),
        compiler_params=pltpu.CompilerParams(
            # batch axis is embarrassingly parallel -> megacore sharding on v7x
            dimension_semantics=("parallel",),
        ),
    )(xt, w1t, b1c, w2t, b2c)

    # result rows come out already permuted (and already f32); un-permute only
    # the tiny log_det so it stays in original row order (matches the torch
    # reference).  inv_perm is precomputed (scatter), no argsort on this path.
    result = res_t[:, :B].T                                   # (B, D) f32
    if inv_perm is None:
        inv_perm = jnp.zeros((B,), jnp.int32).at[perm].set(
            jnp.arange(B, dtype=jnp.int32))
    log_det = ld_t[0, :B][inv_perm]                           # (B,)
    return result, log_det


# ----------------------------------------------------------------------------
if __name__ == "__main__":
    B, D, H = 512, 16, 32                     # batch, in_dim, h_dim
    key = jax.random.PRNGKey(0)
    kx, kw1, kb1, kw2, kb2, kperm = jax.random.split(key, 6)

    x = jax.random.normal(kx, (B, D), dtype=jnp.float32)

    # nn.Linear-style deterministic init: U(-1/sqrt(fan_in), 1/sqrt(fan_in))
    lim1 = 1.0 / jnp.sqrt(D)
    lim2 = 1.0 / jnp.sqrt(H)
    w1 = jax.random.uniform(kw1, (D, H), jnp.float32, -lim1, lim1)
    b1 = jax.random.uniform(kb1, (H,), jnp.float32, -lim1, lim1)
    w2 = jax.random.uniform(kw2, (H, 2 * D), jnp.float32, -lim2, lim2)
    b2 = jax.random.uniform(kb2, (2 * D,), jnp.float32, -lim2, lim2)

    mask1, mask2 = made_masks(D, H)
    # TODO(synk): torch.randperm draws a fresh device-random permutation every
    # forward; here a fixed seeded permutation (and its precomputed inverse)
    # is passed in explicitly.
    perm = jax.random.permutation(kperm, B)
    inv_perm = jnp.zeros((B,), jnp.int32).at[perm].set(
        jnp.arange(B, dtype=jnp.int32))

    result, log_det = ia_transform(x, w1, b1, w2, b2, mask1, mask2,
                                   perm, inv_perm)           # bt=256 -> 2 grid steps
    jax.block_until_ready((result, log_det))
    assert result.shape == (B, D) and log_det.shape == (B,)

    # Pure-JAX reference following the same bf16-operand / f32-accumulate path.
    xq_bf = x.astype(jnp.bfloat16)
    xq = xq_bf.astype(jnp.float32)
    w1m = (w1 * mask1).astype(jnp.bfloat16)
    w2m = (w2 * mask2).astype(jnp.bfloat16)
    h_ref = jnp.maximum(
        jnp.dot(xq_bf, w1m, preferred_element_type=jnp.float32) + b1, 0.0)
    out_ref = jnp.dot(h_ref.astype(jnp.bfloat16), w2m,
                      preferred_element_type=jnp.float32) + b2
    mu_ref, ls_ref = out_ref[:, :D], out_ref[:, D:]
    res_ref = (mu_ref + xq * jnp.exp(ls_ref))[perm]
    ld_ref = ls_ref.sum(axis=1)

    res_tol = 5e-2 + 1e-2 * float(jnp.max(jnp.abs(res_ref)))
    ld_tol = 1e-2 + 1e-2 * float(jnp.max(jnp.abs(ld_ref)))
    assert float(jnp.max(jnp.abs(result - res_ref))) < res_tol
    assert float(jnp.max(jnp.abs(log_det - ld_ref))) < ld_tol

    print("KERNEL_OK")
</pallas_src>

<mosaic_0001>
module attributes {stable_mosaic.version = 11 : i64} {
  func.func @_ia_kernel(%arg0: i32, %arg1: memref<16x256xbf16, #tpu.memory_space<vmem>>, %arg2: memref<32x16xbf16, #tpu.memory_space<vmem>>, %arg3: memref<32x1xf32, #tpu.memory_space<vmem>>, %arg4: memref<32x32xbf16, #tpu.memory_space<vmem>>, %arg5: memref<32x1xf32, #tpu.memory_space<vmem>>, %arg6: memref<16x256xf32, #tpu.memory_space<vmem>>, %arg7: memref<1x256xf32, #tpu.memory_space<vmem>>) attributes {dimension_semantics = [#tpu.dimension_semantics<parallel>], iteration_bounds = array<i64: 2>, scalar_prefetch = 0 : i64, scratch_operands = 0 : i64, tpu.core_type = #tpu.core_type<tc>, window_params = [{transform_indices = @transform_0, window_bounds = array<i64: 16, 256>}, {pipeline_mode = #tpu.pipeline_mode<synchronous>, transform_indices = @transform_1, window_bounds = array<i64: 32, 16>}, {pipeline_mode = #tpu.pipeline_mode<synchronous>, transform_indices = @transform_2, window_bounds = array<i64: 32, 1>}, {pipeline_mode = #tpu.pipeline_mode<synchronous>, transform_indices = @transform_3, window_bounds = array<i64: 32, 32>}, {pipeline_mode = #tpu.pipeline_mode<synchronous>, transform_indices = @transform_4, window_bounds = array<i64: 32, 1>}, {transform_indices = @transform_5, window_bounds = array<i64: 16, 256>}, {transform_indices = @transform_6, window_bounds = array<i64: 1, 256>}]} {
    %c0 = arith.constant 0 : index
    %c0_0 = arith.constant 0 : index
    %0 = vector.load %arg1[%c0, %c0_0] : memref<16x256xbf16, #tpu.memory_space<vmem>>, vector<16x256xbf16>
    %c0_1 = arith.constant 0 : index
    %c0_2 = arith.constant 0 : index
    %1 = vector.load %arg2[%c0_1, %c0_2] : memref<32x16xbf16, #tpu.memory_space<vmem>>, vector<32x16xbf16>
    %cst = arith.constant dense<0.000000e+00> : vector<32x256xf32>
    %2 = tpu.matmul %1, %0, %cst {dimension_numbers = #tpu.dot_dimension_numbers<[1], [0], [0], [1], [0, 0, 1, 1], [], []>} : vector<32x16xbf16>, vector<16x256xbf16>, vector<32x256xf32> -> vector<32x256xf32>
    %c0_3 = arith.constant 0 : index
    %c0_4 = arith.constant 0 : index
    %3 = vector.load %arg3[%c0_3, %c0_4] : memref<32x1xf32, #tpu.memory_space<vmem>>, vector<32x1xf32>
    %4 = vector.broadcast %3 : vector<32x1xf32> to vector<32x256xf32>
    %5 = arith.addf %2, %4 : vector<32x256xf32>
    %cst_5 = arith.constant 0.000000e+00 : f32
    %6 = vector.broadcast %cst_5 : f32 to vector<32x256xf32>
    %7 = arith.maximumf %5, %6 : vector<32x256xf32>
    %c0_6 = arith.constant 0 : index
    %c0_7 = arith.constant 0 : index
    %8 = vector.load %arg4[%c0_6, %c0_7] : memref<32x32xbf16, #tpu.memory_space<vmem>>, vector<32x32xbf16>
    %9 = arith.truncf %7 : vector<32x256xf32> to vector<32x256xbf16>
    %cst_8 = arith.constant dense<0.000000e+00> : vector<32x256xf32>
    %10 = tpu.matmul %8, %9, %cst_8 {dimension_numbers = #tpu.dot_dimension_numbers<[1], [0], [0], [1], [0, 0, 1, 1], [], []>} : vector<32x32xbf16>, vector<32x256xbf16>, vector<32x256xf32> -> vector<32x256xf32>
    %c0_9 = arith.constant 0 : index
    %c0_10 = arith.constant 0 : index
    %11 = vector.load %arg5[%c0_9, %c0_10] : memref<32x1xf32, #tpu.memory_space<vmem>>, vector<32x1xf32>
    %12 = vector.broadcast %11 : vector<32x1xf32> to vector<32x256xf32>
    %13 = arith.addf %10, %12 : vector<32x256xf32>
    %14 = vector.extract_strided_slice %13 {offsets = [0, 0], sizes = [16, 256], strides = [1, 1]} : vector<32x256xf32> to vector<16x256xf32>
    %15 = vector.extract_strided_slice %13 {offsets = [16, 0], sizes = [16, 256], strides = [1, 1]} : vector<32x256xf32> to vector<16x256xf32>
    %16 = arith.extf %0 : vector<16x256xbf16> to vector<16x256xf32>
    %17 = math.exp %15 : vector<16x256xf32>
    %18 = arith.mulf %16, %17 : vector<16x256xf32>
    %19 = arith.addf %14, %18 : vector<16x256xf32>
    %c0_11 = arith.constant 0 : index
    %c0_12 = arith.constant 0 : index
    %20 = vector.load %arg6[%c0_11, %c0_12] : memref<16x256xf32, #tpu.memory_space<vmem>>, vector<16x256xf32>
    tpu.vector_store %arg6[%c0_11, %c0_12], %19 {strides = array<i32>} : memref<16x256xf32, #tpu.memory_space<vmem>>, vector<16x256xf32>,
    %cst_13 = arith.constant dense<0.000000e+00> : vector<256xf32>
    %21 = vector.multi_reduction <add>, %15, %cst_13 [0] : vector<16x256xf32> to vector<256xf32>
    %22 = vector.shape_cast %21 : vector<256xf32> to vector<1x256xf32>
    %c0_14 = arith.constant 0 : index
    %c0_15 = arith.constant 0 : index
    %23 = vector.load %arg7[%c0_14, %c0_15] : memref<1x256xf32, #tpu.memory_space<vmem>>, vector<1x256xf32>
    tpu.vector_store %arg7[%c0_14, %c0_15], %22 {strides = array<i32>} : memref<1x256xf32, #tpu.memory_space<vmem>>, vector<1x256xf32>,
    return
  }
  func.func @transform_0(%arg0: i32) -> (i32, i32) {
    %c0_i32 = arith.constant 0 : i32
    %c0_i32_0 = arith.constant 0 : i32
    return %c0_i32, %arg0 : i32, i32
  }
  func.func @transform_1(%arg0: i32) -> (i32, i32) {
    %c0_i32 = arith.constant 0 : i32
    %c0_i32_0 = arith.constant 0 : i32
    %c0_i32_1 = arith.constant 0 : i32
    return %c0_i32, %c0_i32_0 : i32, i32
  }
  func.func @transform_2(%arg0: i32) -> (i32, i32) {
    %c0_i32 = arith.constant 0 : i32
    %c0_i32_0 = arith.constant 0 : i32
    %c0_i32_1 = arith.constant 0 : i32
    return %c0_i32, %c0_i32_0 : i32, i32
  }
  func.func @transform_3(%arg0: i32) -> (i32, i32) {
    %c0_i32 = arith.constant 0 : i32
    %c0_i32_0 = arith.constant 0 : i32
    %c0_i32_1 = arith.constant 0 : i32
    return %c0_i32, %c0_i32_0 : i32, i32
  }
  func.func @transform_4(%arg0: i32) -> (i32, i32) {
    %c0_i32 = arith.constant 0 : i32
    %c0_i32_0 = arith.constant 0 : i32
    %c0_i32_1 = arith.constant 0 : i32
    return %c0_i32, %c0_i32_0 : i32, i32
  }
  func.func @transform_5(%arg0: i32) -> (i32, i32) {
    %c0_i32 = arith.constant 0 : i32
    %c0_i32_0 = arith.constant 0 : i32
    return %c0_i32, %arg0 : i32, i32
  }
  func.func @transform_6(%arg0: i32) -> (i32, i32) {
    %c0_i32 = arith.constant 0 : i32
    %c0_i32_0 = arith.constant 0 : i32
    return %c0_i32, %arg0 : i32, i32
  }
}

</mosaic_0001>

<llo_original>
// kernel: tpu_custom_call.1
$region0: #{tpu_custom_call.1}
  #allocation0 [shape = 'u32[]', space=smem, size = 0x4, offset = 0x4, fixed_abs, tag = 'smem constant byte address 0x4 - core index']
  #allocation1 [shape = 'u32[144,128]{1,0:T(1,128)}', space=vmem, size = 0x12000, scoped, tag = 'internal scratch']
  %s0 = inlined_call_operand.vmem [shape: bf16[16,512], index: 0, kind: input, shape index: {}]
  %s1 = inlined_call_operand.vmem [shape: bf16[32,16], index: 1, kind: input, shape index: {}]
  %s2 = inlined_call_operand.vmem [shape: f32[32,1], index: 2, kind: input, shape index: {}]
  %s3 = inlined_call_operand.vmem [shape: bf16[32,32], index: 3, kind: input, shape index: {}]
  %s4 = inlined_call_operand.vmem [shape: f32[32,1], index: 4, kind: input, shape index: {}]
  %s5 = inlined_call_operand.hbm [shape: f32[16,512], index: 5, kind: output, shape index: {0}]
  %s6 = inlined_call_operand.hbm [shape: f32[1,512], index: 6, kind: output, shape index: {1}]
  %7 = xla_tuple %s5, %s6
  %s8 = sld [smem:[#allocation0]]
  $region99: #{tpu_custom_call.1} parent=0
    _
  %s10 = ssub.s32 1, %s8
  %s11 = scalar_select 0, %s10, %s8
  $region1: #{tpu_custom_call.1} parent=0
    #allocation2 [shape = 'u8[16384]{0}', space=vmem, size = 0x4000, scoped, tag = 'input window, operand 0']
    #allocation3 [shape = 'u8[32768]{0}', space=vmem, size = 0x8000, scoped, tag = 'output window, operand 0']
    #allocation4 [shape = 's32[2]{0}', space=sflag, size = 0x8, scoped, tag = 'scoped memory for tpu_custom_call.1']
    #allocation5 [shape = 'u8[2048]{0}', space=vmem, size = 0x800, scoped, tag = 'output window, operand 1']
    #allocation6 [shape = 's32[2]{0}', space=sflag, size = 0x8, scoped, tag = 'scoped memory for tpu_custom_call.1']
    %12 = vsyncpa [#allocation4], 0
    %s13 = scalar_lea.sflag [#allocation4], 1
    %14 = vsyncpa %s13, 0
    %15 = vsyncpa [#allocation6], 0
    %s16 = scalar_lea.sflag [#allocation6], 1
    %17 = vsyncpa %s16, 0
    loop: start=0, step=1, limit=4
    $region2: #{tpu_custom_call.1} parent=1 // loop_pre_header
      _
    $region3: #{tpu_custom_call.1} parent=1 // loop_header
      %s19 = sphi 0, %s23
      %p20 = scmp.ge.s32.totalorder %s19, 4
      %s29 = sphi 0, %s31
      %s32 = sphi 0, %s29
      %s33 = sphi 0, %s32
      %s49 = sphi 0, %s33
      %s53 = sphi 0, %s53
      %s55 = sphi 0, %s53
      %s56 = sphi 0, %s55
      %s70 = sphi 0, %s56
      %s74 = sphi 0, %s74
      %s76 = sphi 0, %s74
      %s77 = sphi 0, %s76
      %s91 = sphi 0, %s77
      %s95 = sphi 0, %s95
      %s97 = sphi 0, %s95
      %s98 = sphi 0, %s97
      %s112 = sphi 0, %s98
      %s116 = sphi 0, %s116
      %s118 = sphi 0, %s116
      %s119 = sphi 0, %s118
      %s133 = sphi 0, %s119
      %s139 = sphi 0, %s141
      %s142 = sphi 0, %s139
      %s143 = sphi 0, %s142
      %s159 = sphi 0, %s143
      %s165 = sphi 0, %s167
      %s168 = sphi 0, %s165
      %s169 = sphi 0, %s168
      %s185 = sphi 0, %s169
    $region4: #{tpu_custom_call.1} parent=1 // loop_header_branch
      %22 = sbr.rel (%p20) target = $region8
    $region5: #{tpu_custom_call.1} parent=1 // loop_body
      %s24 = ssub.s32 %s19, 1
      %s25 = ssub.s32 %s19, 2
      %s26 = sadd.s32 %s19, 1
      %s27 = ssub.s32 %s19, %s26
      %p28 = scmp.eq.s32.totalorder %s27, 0
      %s30 = sadd.s32 %s29, 1
      %s31 = scalar_select %p28, %s29, %s30
      %p34 = pneg %p28
      %p35 = scmp.eq.s32.totalorder %s19, 1
      %p36 = por %p34, %p35
      %p37 = scmp.ne.s32.totalorder %s29, %s32
      %p38 = scmp.eq.s32.totalorder %s19, 0
      %p39 = por %p37, %p38
      %p40 = scmp.ne.s32.totalorder %s29, %s32
      %p41 = scmp.eq.s32.totalorder %s24, 1
      %p42 = por %p40, %p41
      %p43 = scmp.ne.s32.totalorder %s32, %s33
      %p44 = scmp.eq.s32.totalorder %s24, 0
      %p45 = por %p43, %p44
      %p46 = scmp.ne.s32.totalorder %s32, %s33
      %p47 = scmp.eq.s32.totalorder %s25, 1
      %p48 = por %p46, %p47
      %p50 = scmp.ne.s32.totalorder %s33, %s49
      %p51 = scmp.eq.s32.totalorder %s25, 0
      %p52 = por %p50, %p51
      %s54 = sadd.s32 %s53, 1
      %p57 = scmp.eq.s32.totalorder %s19, 1
      %p58 = scmp.ne.s32.totalorder %s53, %s55
      %p59 = scmp.eq.s32.totalorder %s19, 0
      %p60 = por %p58, %p59
      %p61 = scmp.ne.s32.totalorder %s53, %s55
      %p62 = scmp.eq.s32.totalorder %s24, 1
      %p63 = por %p61, %p62
      %p64 = scmp.ne.s32.totalorder %s55, %s56
      %p65 = scmp.eq.s32.totalorder %s24, 0
      %p66 = por %p64, %p65
      %p67 = scmp.ne.s32.totalorder %s55, %s56
      %p68 = scmp.eq.s32.totalorder %s25, 1
      %p69 = por %p67, %p68
      %p71 = scmp.ne.s32.totalorder %s56, %s70
      %p72 = scmp.eq.s32.totalorder %s25, 0
      %p73 = por %p71, %p72
      %s75 = sadd.s32 %s74, 1
      %p78 = scmp.eq.s32.totalorder %s19, 1
      %p79 = scmp.ne.s32.totalorder %s74, %s76
      %p80 = scmp.eq.s32.totalorder %s19, 0
      %p81 = por %p79, %p80
      %p82 = scmp.ne.s32.totalorder %s74, %s76
      %p83 = scmp.eq.s32.totalorder %s24, 1
      %p84 = por %p82, %p83
      %p85 = scmp.ne.s32.totalorder %s76, %s77
      %p86 = scmp.eq.s32.totalorder %s24, 0
      %p87 = por %p85, %p86
      %p88 = scmp.ne.s32.totalorder %s76, %s77
      %p89 = scmp.eq.s32.totalorder %s25, 1
      %p90 = por %p88, %p89
      %p92 = scmp.ne.s32.totalorder %s77, %s91
      %p93 = scmp.eq.s32.totalorder %s25, 0
      %p94 = por %p92, %p93
      %s96 = sadd.s32 %s95, 1
      %p99 = scmp.eq.s32.totalorder %s19, 1
      %p100 = scmp.ne.s32.totalorder %s95, %s97
      %p101 = scmp.eq.s32.totalorder %s19, 0
      %p102 = por %p100, %p101
      %p103 = scmp.ne.s32.totalorder %s95, %s97
      %p104 = scmp.eq.s32.totalorder %s24, 1
      %p105 = por %p103, %p104
      %p106 = scmp.ne.s32.totalorder %s97, %s98
      %p107 = scmp.eq.s32.totalorder %s24, 0
      %p108 = por %p106, %p107
      %p109 = scmp.ne.s32.totalorder %s97, %s98
      %p110 = scmp.eq.s32.totalorder %s25, 1
      %p111 = por %p109, %p110
      %p113 = scmp.ne.s32.totalorder %s98, %s112
      %p114 = scmp.eq.s32.totalorder %s25, 0
      %p115 = por %p113, %p114
      %s117 = sadd.s32 %s116, 1
      %p120 = scmp.eq.s32.totalorder %s19, 1
      %p121 = scmp.ne.s32.totalorder %s116, %s118
      %p122 = scmp.eq.s32.totalorder %s19, 0
      %p123 = por %p121, %p122
      %p124 = scmp.ne.s32.totalorder %s116, %s118
      %p125 = scmp.eq.s32.totalorder %s24, 1
      %p126 = por %p124, %p125
      %p127 = scmp.ne.s32.totalorder %s118, %s119
      %p128 = scmp.eq.s32.totalorder %s24, 0
      %p129 = por %p127, %p128
      %p130 = scmp.ne.s32.totalorder %s118, %s119
      %p131 = scmp.eq.s32.totalorder %s25, 1
      %p132 = por %p130, %p131
      %p134 = scmp.ne.s32.totalorder %s119, %s133
      %p135 = scmp.eq.s32.totalorder %s25, 0
      %p136 = por %p134, %p135
      %s137 = ssub.s32 %s19, %s26
      %p138 = scmp.eq.s32.totalorder %s137, 0
      %s140 = sadd.s32 %s139, 1
      %s141 = scalar_select %p138, %s139, %s140
      %p144 = pneg %p138
      %p145 = scmp.eq.s32.totalorder %s19, 1
      %p146 = por %p144, %p145
      %p147 = scmp.ne.s32.totalorder %s139, %s142
      %p148 = scmp.eq.s32.totalorder %s19, 0
      %p149 = por %p147, %p148
      %p150 = scmp.ne.s32.totalorder %s139, %s142
      %p151 = scmp.eq.s32.totalorder %s24, 1
      %p152 = por %p150, %p151
      %p153 = scmp.ne.s32.totalorder %s142, %s143
      %p154 = scmp.eq.s32.totalorder %s24, 0
      %p155 = por %p153, %p154
      %p156 = scmp.ne.s32.totalorder %s142, %s143
      %p157 = scmp.eq.s32.totalorder %s25, 1
      %p158 = por %p156, %p157
      %p160 = scmp.ne.s32.totalorder %s143, %s159
      %p161 = scmp.eq.s32.totalorder %s25, 0
      %p162 = por %p160, %p161
      %s163 = ssub.s32 %s19, %s26
      %p164 = scmp.eq.s32.totalorder %s163, 0
      %s166 = sadd.s32 %s165, 1
      %s167 = scalar_select %p164, %s165, %s166
      %p170 = pneg %p164
      %p171 = scmp.eq.s32.totalorder %s19, 1
      %p172 = por %p170, %p171
      %p173 = scmp.ne.s32.totalorder %s165, %s168
      %p174 = scmp.eq.s32.totalorder %s19, 0
      %p175 = por %p173, %p174
      %p176 = scmp.ne.s32.totalorder %s165, %s168
      %p177 = scmp.eq.s32.totalorder %s24, 1
      %p178 = por %p176, %p177
      %p179 = scmp.ne.s32.totalorder %s168, %s169
      %p180 = scmp.eq.s32.totalorder %s24, 0
      %p181 = por %p179, %p180
      %p182 = scmp.ne.s32.totalorder %s168, %s169
      %p183 = scmp.eq.s32.totalorder %s25, 1
      %p184 = por %p182, %p183
      %p186 = scmp.ne.s32.totalorder %s169, %s185
      %p187 = scmp.eq.s32.totalorder %s25, 0
      %p188 = por %p186, %p187
      %p189 = scmp.le.s32.totalorder 1, %s19
      %p190 = scmp.lt.s32.totalorder %s19, 3
      %p191 = pnand %p189, %p190
      %p192 = pneg %p191
      // Predicated region
      $region9: #{tpu_custom_call.1} parent=5 // pred_check
        _
      $region10: #{tpu_custom_call.1} parent=5 // pred_check_branch
        %194 = sbr.rel (%p191) target = $region12
      $region11: #{tpu_custom_call.1} parent=5 // pred_region
        %s195 = ssub.s32 %s19, 1
        // Predicated region
        $region13: #{tpu_custom_call.1} parent=11 // pred_check
          %p196 = pneg %p66
        $region14: #{tpu_custom_call.1} parent=11 // pred_check_branch
          %198 = sbr.rel (%p196) target = $region16
        $region15: #{tpu_custom_call.1} parent=11 // pred_region
          _
        $region16: #{tpu_custom_call.1} parent=11 // pred_fallthru
          _
        // Predicated region
        $region17: #{tpu_custom_call.1} parent=11 // pred_check
          %p199 = pneg %p87
        $region18: #{tpu_custom_call.1} parent=11 // pred_check_branch
          %201 = sbr.rel (%p199) target = $region20
        $region19: #{tpu_custom_call.1} parent=11 // pred_region
          _
        $region20: #{tpu_custom_call.1} parent=11 // pred_fallthru
          _
        // Predicated region
        $region21: #{tpu_custom_call.1} parent=11 // pred_check
          %p202 = pneg %p108
        $region22: #{tpu_custom_call.1} parent=11 // pred_check_branch
          %204 = sbr.rel (%p202) target = $region24
        $region23: #{tpu_custom_call.1} parent=11 // pred_region
          _
        $region24: #{tpu_custom_call.1} parent=11 // pred_fallthru
          _
        // Predicated region
        $region25: #{tpu_custom_call.1} parent=11 // pred_check
          %p205 = pneg %p129
        $region26: #{tpu_custom_call.1} parent=11 // pred_check_branch
          %207 = sbr.rel (%p205) target = $region28
        $region27: #{tpu_custom_call.1} parent=11 // pred_region
          _
        $region28: #{tpu_custom_call.1} parent=11 // pred_fallthru
          _
      $region12: #{tpu_custom_call.1} parent=5 // pred_fallthru
        _
      %p208 = scmp.lt.s32.totalorder %s19, 2
      // Predicated region
      $region29: #{tpu_custom_call.1} parent=5 // pred_check
        %p209 = pneg %p208
      $region30: #{tpu_custom_call.1} parent=5 // pred_check_branch
        %211 = sbr.rel (%p209) target = $region32
      $region31: #{tpu_custom_call.1} parent=5 // pred_region
        // Predicated region
        $region33: #{tpu_custom_call.1} parent=31 // pred_check
          %p212 = pneg %p39
        $region34: #{tpu_custom_call.1} parent=31 // pred_check_branch
          %214 = sbr.rel (%p212) target = $region36
        $region35: #{tpu_custom_call.1} parent=31 // pred_region
          %s215 = sand.u32 %s29, 1
          %s216 = sand.u32 %s29, 1
          %s217 = smul.addr %s216, 16
          %s218 = scalar_lea.vmem [#allocation2], %s217
          %s219 = smul.u32 2, %s19
          %s220 = smul.addr %s219, 4
          %s221 = scalar_lea.vmem %s0, %s220
          // Predicated region
          $region37: #{tpu_custom_call.1} parent=35 // pred_check
            _
          $region38: #{tpu_custom_call.1} parent=35 // pred_check_branch
            %223 = sbr.rel (0) target = $region40
          $region39: #{tpu_custom_call.1} parent=35 // pred_region
            // Predicated region
            $region41: #{tpu_custom_call.1} parent=39 // pred_check
              _
            $region42: #{tpu_custom_call.1} parent=39 // pred_check_branch
              %225 = sbr.rel (0) target = $region44
            $region43: #{tpu_custom_call.1} parent=39 // pred_region
              // Predicated region
              $region56: #{tpu_custom_call.1} parent=43 // pred_check
                _
              $region57: #{tpu_custom_call.1} parent=43 // pred_check_branch
                %243 = sbr.rel (0) target = $region59
              $region58: #{tpu_custom_call.1} parent=43 // pred_region
                loop: start=0, step=1, limit=1
                $region60: #{tpu_custom_call.1} parent=58 // loop_pre_header
                  _
                $region61: #{tpu_custom_call.1} parent=58 // loop_header
                  %s245 = sphi 0, %s249
                  %p246 = scmp.ge.s32.totalorder %s245, 1
                  %s250 = sphi %s221, %s221
                  %s251 = sphi %s218, %s218
                $region62: #{tpu_custom_call.1} parent=58 // loop_header_branch
                  %248 = sbr.rel (%p246) target = $region66
                $region63: #{tpu_custom_call.1} parent=58 // loop_body
                  %v252 = vld [vmem:[%s250] sm:$0xff]
                  %253 = vst [vmem:[%s251] sm:$0xff] %v252
                  %v254 = vld [vmem:[%s250 + $0x10] sm:$0xff]
                  %255 = vst [vmem:[%s251 + $0x8] sm:$0xff] %v254
                $region64: #{tpu_custom_call.1} parent=58 // loop_footer
                  %s249 = sadd.s32 1, %s245
                $region65: #{tpu_custom_call.1} parent=58 // loop_footer_branch
                  %244 = sbr.rel target = $region61
                $region66: #{tpu_custom_call.1} parent=58 // loop_exit
                  _
              $region59: #{tpu_custom_call.1} parent=43 // pred_fallthru
                _
              // Predicated region
              $region67: #{tpu_custom_call.1} parent=43 // pred_check
                _
              $region68: #{tpu_custom_call.1} parent=43 // pred_check_branch
                %257 = sbr.rel target = $region70
              $region69: #{tpu_custom_call.1} parent=43 // pred_region
                _
              $region70: #{tpu_custom_call.1} parent=43 // pred_fallthru
                _
            $region44: #{tpu_custom_call.1} parent=39 // pred_fallthru
              _
            // Predicated region
            $region45: #{tpu_custom_call.1} parent=39 // pred_check
              _
            $region46: #{tpu_custom_call.1} parent=39 // pred_check_branch
              %227 = sbr.rel target = $region48
            $region47: #{tpu_custom_call.1} parent=39 // pred_region
              %s229 = ssub.s32 256, 1
              loop: start=0, step=1, limit=1
              $region49: #{tpu_custom_call.1} parent=47 // loop_pre_header
                _
              $region50: #{tpu_custom_call.1} parent=47 // loop_header
                %s231 = sphi 0, %s235
                %p232 = scmp.ge.s32.totalorder %s231, 1
                %s236 = sphi %s221, %s221
                %s237 = sphi %s218, %s218
              $region51: #{tpu_custom_call.1} parent=47 // loop_header_branch
                %234 = sbr.rel (%p232) target = $region55
              $region52: #{tpu_custom_call.1} parent=47 // loop_body
                %v238 = vld [vmem:[%s236] sm:%s229]
                %239 = vst [vmem:[%s237] sm:%s229] %v238
                %v240 = vld [vmem:[%s236 + $0x10] sm:%s229]
                %241 = vst [vmem:[%s237 + $0x8] sm:%s229] %v240
              $region53: #{tpu_custom_call.1} parent=47 // loop_footer
                %s235 = sadd.s32 1, %s231
              $region54: #{tpu_custom_call.1} parent=47 // loop_footer_branch
                %230 = sbr.rel target = $region50
              $region55: #{tpu_custom_call.1} parent=47 // loop_exit
                _
            $region48: #{tpu_custom_call.1} parent=39 // pred_fallthru
              _
          $region40: #{tpu_custom_call.1} parent=35 // pred_fallthru
            _
          %258 = vnop
        $region36: #{tpu_custom_call.1} parent=31 // pred_fallthru
          _
      $region32: #{tpu_custom_call.1} parent=5 // pred_fallthru
        _
      %p259 = scmp.le.s32.totalorder 1, %s19
      %p260 = scmp.lt.s32.totalorder %s19, 3
      %p261 = pnand %p259, %p260
      %p262 = pneg %p261
      // Predicated region
      $region71: #{tpu_custom_call.1} parent=5 // pred_check
        _
      $region72: #{tpu_custom_call.1} parent=5 // pred_check_branch
        %264 = sbr.rel (%p261) target = $region74
      $region73: #{tpu_custom_call.1} parent=5 // pred_region
        %s265 = ssub.s32 %s19, 1
        %s266 = sand.u32 %s32, 1
        %s267 = sand.u32 %s32, 1
        %s268 = smul.addr %s267, 16
        %s269 = scalar_lea.vmem [#allocation2], %s268
        // Predicated region
        $region75: #{tpu_custom_call.1} parent=73 // pred_check
          %p270 = pneg %p45
        $region76: #{tpu_custom_call.1} parent=73 // pred_check_branch
          %272 = sbr.rel (%p270) target = $region78
        $region77: #{tpu_custom_call.1} parent=73 // pred_region
          _
        $region78: #{tpu_custom_call.1} parent=73 // pred_fallthru
          _
        %s273 = sand.u32 %s32, 1
        %s274 = sand.u32 %s32, 1
        %s275 = smul.addr %s274, 16
        %s276 = scalar_lea.vmem [#allocation2], %s275
        %p277 = pneg %p45
        %p278 = pneg %p42
        %p279 = pneg %p66
        %p280 = pneg %p63
        %p281 = pneg %p87
        %p282 = pneg %p84
        %p283 = pneg %p108
        %p284 = pneg %p105
        %p285 = pneg %p129
        %p286 = pneg %p126
        %p287 = pneg %p155
        %p288 = pneg %p152
        %s289 = sand.u32 %s142, 1
        %s290 = scalar_lea.sflag [#allocation4], %s289
        %s291 = sand.u32 %s142, 1
        %s292 = smul.addr %s291, 32
        %s293 = scalar_lea.vmem [#allocation3], %s292
        %p294 = pneg %p181
        %p295 = pneg %p178
        %s296 = sand.u32 %s168, 1
        %s297 = scalar_lea.sflag [#allocation6], %s296
        %s298 = sand.u32 %s168, 1
        %s299 = smul.addr %s298, 2
        %s300 = scalar_lea.vmem [#allocation5], %s299
        %s301 = smul.u32 2, %s24
        %s302 = smul.u32 2, %s24
        %s303 = smul.u32 2, %s24
        %v305 = vld [vmem:[%s269] sm:$0xff]
        %v306 = vld [vmem:[%s269 + $0x8] sm:$0xff]
        %v307 = vld [vmem:[%s1] sm:$0xf]
        %v308 = vld [vmem:[%s1 + $0x4] sm:$0xf]
        %v309 = vld [vmem:[%s1 + $0x8] sm:$0xf]
        %v310 = vld [vmem:[%s1 + $0xc] sm:$0xf]
        %v311 = vld [vmem:[%s2] sm:$0xff]
        %v312 = vld [vmem:[%s2 + $0x8] sm:$0xff]
        %v313 = vld [vmem:[%s2 + $0x10] sm:$0xff]
        %v314 = vld [vmem:[%s2 + $0x18] sm:$0xff]
        %316 = vset.pattern.permute.xlu0 0
        %317 = vperm.xlu0 %316, %v311
        %v318 = vpop.permute.xlu0 %317
        %321 = vset.pattern.permute.xlu0 0
        %322 = vperm.xlu0 %321, %v312
        %v323 = vpop.permute.xlu0 %322
        %326 = vset.pattern.permute.xlu0 0
        %327 = vperm.xlu0 %326, %v313
        %v328 = vpop.permute.xlu0 %327
        %331 = vset.pattern.permute.xlu0 0
        %332 = vperm.xlu0 %331, %v314
        %v333 = vpop.permute.xlu0 %332
        %v339 = vunpack.c.l.b16 %v307
        %v340 = vunpack.c.l.b16 %v308
        %v341 = vunpack.c.l.b16 %v309
        %v342 = vunpack.c.l.b16 %v310
        %v343 = vpack.c.b16 %v340, %v339
        %v344 = vpack.c.b16 %v342, %v341
        %v347 = vunpack.c.l.b16 %v305
        %v348 = vunpack.c.h.b16 %v305
        %v349 = vunpack.c.l.b16 %v306
        %v350 = vunpack.c.h.b16 %v306
        %v351 = vpack.c.b16 %v349, %v347
        %v352 = vpack.c.b16 %v350, %v348
        %vm355 = vcmask 130048
        %v357 = vsel %vm355, %v343, 0
        %v360 = vsel %vm355, %v344, 0
        %362 = vmatprep.subr.bf16.mxu0 0
        %363 = vmatpush1.bf16.msra.mxu0 0
        %364 = vmatprep.subr.bf16.mxu0 0
        %365 = vmatpush1.bf16.msra.mxu0 0
        %366 = vmatprep.subr.bf16.mxu0 0
        %367 = vmatpush1.bf16.msra.mxu0 0
        %368 = vmatprep.subr.bf16.mxu0 0
        %369 = vmatpush1.bf16.msra.mxu0 0
        %370 = vmatprep.subr.bf16.mxu0 0
        %371 = vmatpush1.bf16.msra.mxu0 0
        %372 = vmatprep.subr.bf16.mxu0 0
        %373 = vmatpush1.bf16.msra.mxu0 0
        %374 = vmatprep.subr.bf16.mxu0 0
        %375 = vmatpush1.bf16.msra.mxu0 0
        %376 = vmatprep.subr.bf16.mxu0 %v352
        %377 = vmatpush1.bf16.msra.mxu0 %v351
        %378 = vmatprep.subr.bf16.mxu0 0
        %379 = vmatpush2.bf16.msra.mxu0 0
        %380 = vmatprep.subr.bf16.mxu0 0
        %381 = vmatpush2.bf16.msra.mxu0 0
        %382 = vmatprep.subr.bf16.mxu0 0
        %383 = vmatpush2.bf16.msra.mxu0 0
        %384 = vmatprep.subr.bf16.mxu0 0
        %385 = vmatpush2.bf16.msra.mxu0 0
        %386 = vmatprep.subr.bf16.mxu0 0
        %387 = vmatpush2.bf16.msra.mxu0 0
        %388 = vmatprep.subr.bf16.mxu0 0
        %389 = vmatpush2.bf16.msra.mxu0 0
        %390 = vmatprep.subr.bf16.mxu0 0
        %391 = vmatpush2.bf16.msra.mxu0 0
        %392 = vmatprep.subr.bf16.mxu0 0
        %393 = vmatpush2.bf16.msra.mxu0 0
        %394 = vmatprep.mubr.bf16.mxu0 0
        %395 = vmatmul.mubr.bf16.gmra.mxu0 %v357
        %v396 = vpop.f32.mrf.mxu0
        %v397 = vadd.f32 %v318, %v396
        %v398 = vpop.f32.mrf.mxu0
        %v399 = vadd.f32 %v318, %v398
        %v400 = vpop.f32.mrf.mxu0
        %v401 = vadd.f32 %v323, %v400
        %v402 = vpop.f32.mrf.mxu0
        %v403 = vadd.f32 %v323, %v402
        %404 = vmatprep.mubr.bf16.mxu0 0
        %405 = vmatmul.mubr.bf16.gmra.mxu0 %v360
        %v406 = vpop.f32.mrf.mxu0
        %v407 = vadd.f32 %v328, %v406
        %v408 = vpop.f32.mrf.mxu0
        %v409 = vadd.f32 %v328, %v408
        %v410 = vpop.f32.mrf.mxu0
        %v411 = vadd.f32 %v333, %v410
        %v412 = vpop.f32.mrf.mxu0
        %v413 = vadd.f32 %v333, %v412
        %414 = vdwg.mxu0
        %v415 = vmax.f32 %v397, 0.0
        %v416 = vmax.f32 %v399, 0.0
        %v417 = vmax.f32 %v401, 0.0
        %v418 = vmax.f32 %v403, 0.0
        %v419 = vmax.f32 %v407, 0.0
        %v420 = vmax.f32 %v409, 0.0
        %v421 = vmax.f32 %v411, 0.0
        %v422 = vmax.f32 %v413, 0.0
        %v423 = vld [vmem:[%s3] sm:$0xf]
        %v424 = vld [vmem:[%s3 + $0x4] sm:$0xf]
        %v425 = vld [vmem:[%s3 + $0x8] sm:$0xf]
        %v426 = vld [vmem:[%s3 + $0xc] sm:$0xf]
        %v427 = vpack.c.bf16 %v417, %v415
        %v428 = vpack.c.bf16 %v418, %v416
        %v429 = vpack.c.bf16 %v421, %v419
        %v430 = vpack.c.bf16 %v422, %v420
        %v431 = vld [vmem:[%s4] sm:$0xff]
        %v432 = vld [vmem:[%s4 + $0x8] sm:$0xff]
        %v433 = vld [vmem:[%s4 + $0x10] sm:$0xff]
        %v434 = vld [vmem:[%s4 + $0x18] sm:$0xff]
        %436 = vset.pattern.permute.xlu0 0
        %437 = vperm.xlu0 %436, %v431
        %v438 = vpop.permute.xlu0 %437
        %441 = vset.pattern.permute.xlu0 0
        %442 = vperm.xlu0 %441, %v432
        %v443 = vpop.permute.xlu0 %442
        %446 = vset.pattern.permute.xlu0 0
        %447 = vperm.xlu0 %446, %v433
        %v448 = vpop.permute.xlu0 %447
        %451 = vset.pattern.permute.xlu0 0
        %452 = vperm.xlu0 %451, %v434
        %v453 = vpop.permute.xlu0 %452
        %v459 = vunpack.c.l.b16 %v423
        %v460 = vunpack.c.l.b16 %v424
        %v461 = vunpack.c.l.b16 %v425
        %v462 = vunpack.c.l.b16 %v426
        %v463 = vpack.c.b16 %v460, %v459
        %v464 = vpack.c.b16 %v462, %v461
        %vm465 = vcmask 261120
        %v467 = vsel %vm465, %v463, 0
        %v470 = vsel %vm465, %v464, 0
        %472 = vmatprep.subr.bf16.mxu0 0
        %473 = vmatpush1.bf16.msra.mxu0 0
        %474 = vmatprep.subr.bf16.mxu0 0
        %475 = vmatpush1.bf16.msra.mxu0 0
        %476 = vmatprep.subr.bf16.mxu0 0
        %477 = vmatpush1.bf16.msra.mxu0 0
        %478 = vmatprep.subr.bf16.mxu0 0
        %479 = vmatpush1.bf16.msra.mxu0 0
        %480 = vmatprep.subr.bf16.mxu0 0
        %481 = vmatpush1.bf16.msra.mxu0 0
        %482 = vmatprep.subr.bf16.mxu0 0
        %483 = vmatpush1.bf16.msra.mxu0 0
        %484 = vmatprep.subr.bf16.mxu0 %v430
        %485 = vmatpush1.bf16.msra.mxu0 %v429
        %486 = vmatprep.subr.bf16.mxu0 %v428
        %487 = vmatpush1.bf16.msra.mxu0 %v427
        %488 = vmatprep.subr.bf16.mxu0 0
        %489 = vmatpush2.bf16.msra.mxu0 0
        %490 = vmatprep.subr.bf16.mxu0 0
        %491 = vmatpush2.bf16.msra.mxu0 0
        %492 = vmatprep.subr.bf16.mxu0 0
        %493 = vmatpush2.bf16.msra.mxu0 0
        %494 = vmatprep.subr.bf16.mxu0 0
        %495 = vmatpush2.bf16.msra.mxu0 0
        %496 = vmatprep.subr.bf16.mxu0 0
        %497 = vmatpush2.bf16.msra.mxu0 0
        %498 = vmatprep.subr.bf16.mxu0 0
        %499 = vmatpush2.bf16.msra.mxu0 0
        %500 = vmatprep.subr.bf16.mxu0 0
        %501 = vmatpush2.bf16.msra.mxu0 0
        %502 = vmatprep.subr.bf16.mxu0 0
        %503 = vmatpush2.bf16.msra.mxu0 0
        %504 = vmatprep.mubr.bf16.mxu0 0
        %505 = vmatmul.mubr.bf16.gmra.mxu0 %v467
        %v506 = vpop.f32.mrf.mxu0
        %v507 = vadd.f32 %v438, %v506
        %v508 = vpop.f32.mrf.mxu0
        %v509 = vadd.f32 %v438, %v508
        %v510 = vpop.f32.mrf.mxu0
        %v511 = vadd.f32 %v443, %v510
        %v512 = vpop.f32.mrf.mxu0
        %v513 = vadd.f32 %v443, %v512
        %514 = vmatprep.mubr.bf16.mxu0 0
        %515 = vmatmul.mubr.bf16.gmra.mxu0 %v470
        %v516 = vpop.f32.mrf.mxu0
        %v517 = vadd.f32 %v448, %v516
        %v518 = vpop.f32.mrf.mxu0
        %v519 = vadd.f32 %v448, %v518
        %v520 = vpop.f32.mrf.mxu0
        %v521 = vadd.f32 %v453, %v520
        %v522 = vpop.f32.mrf.mxu0
        %v523 = vadd.f32 %v453, %v522
        %524 = vdwg.mxu0
        %v525 = vunpack.c.l.bf16 %v305
        %v526 = vunpack.c.h.bf16 %v305
        %v527 = vunpack.c.l.bf16 %v306
        %v528 = vunpack.c.h.bf16 %v306
        %v529 = vmul.f32 %v517, 1.442695
        %v530 = vpow.pop %v529
        %v531 = vmul.f32 %v519, 1.442695
        %v532 = vpow.pop %v531
        %v533 = vmul.f32 %v521, 1.442695
        %v534 = vpow.pop %v533
        %v535 = vmul.f32 %v523, 1.442695
        %v536 = vpow.pop %v535
        %v537 = vmul.f32 %v525, %v530
        %v538 = vmul.f32 %v526, %v532
        %v539 = vmul.f32 %v527, %v534
        %v540 = vmul.f32 %v528, %v536
        %v541 = vadd.f32 %v507, %v537
        %v542 = vadd.f32 %v509, %v538
        %v543 = vadd.f32 %v511, %v539
        %v544 = vadd.f32 %v513, %v540
        %545 = vst [vmem:[%s293] sm:$0xff] %v541
        %546 = vst [vmem:[%s293 + $0x8] sm:$0xff] %v542
        %547 = vst [vmem:[%s293 + $0x10] sm:$0xff] %v543
        %548 = vst [vmem:[%s293 + $0x18] sm:$0xff] %v544
        %v549 = vadd.f32 %v517, %v521
        %v550 = vrot.slane %v549, 4
        %v551 = vadd.f32 %v549, %v550
        %v552 = vrot.slane %v551, 2
        %v553 = vadd.f32 %v551, %v552
        %v554 = vrot.slane %v553, 1
        %v555 = vadd.f32 %v553, %v554
        %v556 = vadd.f32 %v519, %v523
        %v557 = vrot.slane %v556, 4
        %v558 = vadd.f32 %v556, %v557
        %v559 = vrot.slane %v558, 2
        %v560 = vadd.f32 %v558, %v559
        %v561 = vrot.slane %v560, 1
        %v562 = vadd.f32 %v560, %v561
        %v565 = vcombine.low %v555, %v562
        %v567 = vunpack.c.l.s4 1966171168
        %v568 = vunpack.c.0.s8 %v567
        %v569 = vlaneseq
        %v570 = vshrl.u32 %v569, 7
        %v571 = vsub.s32 %v568, %v570
        %v572 = vrot.slane %v565, %v571
        %v574 = vunpack.c.l.s4 1966171168
        %v575 = vunpack.c.0.s8 %v574
        %v576 = vlaneseq
        %v577 = vshrl.u32 %v576, 7
        %v578 = vsub.s32 %v575, %v577
        %v579 = vrot.slane %v572, %v578
        %v581 = vlaneseq
        %vm582 = vcmp.ge.s32.totalorder %v581, 0
        %vm583 = vcmp.lt.s32.totalorder %v581, 256
        %vm584 = vmand %vm582, %vm583
        %585 = vst.msk [vmem:[%s300] sm:$0x3] %vm584, %v579
        %s586 = sand.u32 %s142, 1
        %s587 = scalar_lea.sflag [#allocation4], %s586
        %s588 = sand.u32 %s142, 1
        %s589 = smul.addr %s588, 32
        %s590 = scalar_lea.vmem [#allocation3], %s589
        %s591 = sand.u32 %s168, 1
        %s592 = scalar_lea.sflag [#allocation6], %s591
        %s593 = sand.u32 %s168, 1
        %s594 = smul.addr %s593, 2
        %s595 = scalar_lea.vmem [#allocation5], %s594
        // Predicated region
        $region79: #{tpu_custom_call.1} parent=73 // pred_check
          %p596 = pneg %p152
        $region80: #{tpu_custom_call.1} parent=73 // pred_check_branch
          %598 = sbr.rel (%p596) target = $region82
        $region81: #{tpu_custom_call.1} parent=73 // pred_region
          %s599 = smul.u32 2, %s24
          %s601 = ssub.s32 512, 512
          %602 = vsyncadd %s587, %s601
          %s603 = smul.addr %s599, 128
          %s604 = scalar_lea.hbm %s5, %s603
          %s605 = sshll.u32 %s590, 4
          %s606 = int_to_ptr.vmem [resolvable:$true] %s605
          %611 = dma.vmem_to_hbm [thread:$0]  %s606, 512, %s604, %s587, 256, 512, 16
        $region82: #{tpu_custom_call.1} parent=73 // pred_fallthru
          _
        // Predicated region
        $region83: #{tpu_custom_call.1} parent=73 // pred_check
          %p612 = pneg %p178
        $region84: #{tpu_custom_call.1} parent=73 // pred_check_branch
          %614 = sbr.rel (%p612) target = $region86
        $region85: #{tpu_custom_call.1} parent=73 // pred_region
          %s615 = smul.u32 2, %s24
          %s617 = ssub.s32 32, 32
          %618 = vsyncadd %s592, %s617
          %s619 = smul.addr %s615, 16
          %s620 = scalar_lea.hbm %s6, %s619
          %s622 = sshll.u32 %s595, 4
          %s623 = int_to_ptr.vmem [resolvable:$true] %s622
          %625 = dma.vmem_to_hbm [thread:$0]  %s623, 32, %s620, %s592
        $region86: #{tpu_custom_call.1} parent=73 // pred_fallthru
          _
      $region74: #{tpu_custom_call.1} parent=5 // pred_fallthru
        _
      %p626 = scmp.le.s32.totalorder 2, %s19
      // Predicated region
      $region87: #{tpu_custom_call.1} parent=5 // pred_check
        %p627 = pneg %p626
      $region88: #{tpu_custom_call.1} parent=5 // pred_check_branch
        %629 = sbr.rel (%p627) target = $region90
      $region89: #{tpu_custom_call.1} parent=5 // pred_region
        %s630 = ssub.s32 %s19, 2
        // Predicated region
        $region91: #{tpu_custom_call.1} parent=89 // pred_check
          %p631 = pneg %p158
        $region92: #{tpu_custom_call.1} parent=89 // pred_check_branch
          %633 = sbr.rel (%p631) target = $region94
        $region93: #{tpu_custom_call.1} parent=89 // pred_region
          %s634 = sand.u32 %s143, 1
          %s635 = scalar_lea.sflag [#allocation4], %s634
          %s636 = sand.u32 %s143, 1
          %s637 = smul.addr %s636, 32
          %s638 = scalar_lea.vmem [#allocation3], %s637
          %639 = dma.done %s635, 512
        $region94: #{tpu_custom_call.1} parent=89 // pred_fallthru
          _
        // Predicated region
        $region95: #{tpu_custom_call.1} parent=89 // pred_check
          %p640 = pneg %p184
        $region96: #{tpu_custom_call.1} parent=89 // pred_check_branch
          %642 = sbr.rel (%p640) target = $region98
        $region97: #{tpu_custom_call.1} parent=89 // pred_region
          %s643 = sand.u32 %s169, 1
          %s644 = scalar_lea.sflag [#allocation6], %s643
          %s645 = sand.u32 %s169, 1
          %s646 = smul.addr %s645, 2
          %s647 = scalar_lea.vmem [#allocation5], %s646
          %648 = dma.done %s644, 32
        $region98: #{tpu_custom_call.1} parent=89 // pred_fallthru
          _
      $region90: #{tpu_custom_call.1} parent=5 // pred_fallthru
        _
    $region6: #{tpu_custom_call.1} parent=1 // loop_footer
      %s23 = sadd.s32 1, %s19
    $region7: #{tpu_custom_call.1} parent=1 // loop_footer_branch
      %18 = sbr.rel target = $region3
    $region8: #{tpu_custom_call.1} parent=1 // loop_exit
      _
    %649 = vsyncpa [#allocation4], 1
    %s650 = scalar_lea.sflag [#allocation4], 1
    %651 = vsyncpa %s650, 1
    %652 = vsyncpa [#allocation6], 1
    %s653 = scalar_lea.sflag [#allocation6], 1
    %654 = vsyncpa %s653, 1

</llo_original>
